<compile_context>
chip_gen: v6e
topology: v6e:2x2x1
jax: 0.10.0
libtpu: 0.0.40
codegen_flags: <defaults>
</compile_context>

<pallas_src>
import functools

import jax
import jax.numpy as jnp
from jax.experimental import pallas as pl
from jax.experimental.pallas import tpu as pltpu

_LANE = 512            # lane-dense last dim (multiple of 128)
_MAX_BLOCK_ROWS = 1024 # 1024 x 512 f32 tile = 2 MiB per buffer; mult. of 32


def _precision_convert_kernel(x_ref, o_ref, *, scale):
    # x_ref: (block_rows, LANE) f32 ; o_ref: (block_rows, LANE) i8
    q = jnp.round(x_ref[...] * scale)
    q = jnp.clip(q, -128.0, 127.0)
    o_ref[...] = q.astype(jnp.int8)


def _choose_block_rows(rows: int) -> int:
    if rows <= _MAX_BLOCK_ROWS:
        # Single block equal to the full (second-to-last) dim — always allowed.
        return rows
    # Multiple of 32 (int8 output sublane tiling) and of 8 (f32 input tiling).
    return _MAX_BLOCK_ROWS


def precision_convert(x: jax.Array, scale: float = 127.0) -> jax.Array:
    """fp32 NCHW tensor -> int8 NCHW tensor (symmetric quantization)."""
    orig_shape = x.shape
    total = x.size

    # Flatten and pad to a multiple of the lane width (no shape asserts).
    flat = x.reshape(-1).astype(jnp.float32)
    pad = (-total) % _LANE
    if pad:
        flat = jnp.pad(flat, (0, pad))
    rows = flat.size // _LANE
    x2d = flat.reshape(rows, _LANE)

    block_rows = _choose_block_rows(rows)
    grid = (pl.cdiv(rows, block_rows),)

    kernel = functools.partial(_precision_convert_kernel, scale=float(scale))

    out2d = pl.pallas_call(
        kernel,
        out_shape=jax.ShapeDtypeStruct((rows, _LANE), jnp.int8),
        grid=grid,
        in_specs=[pl.BlockSpec((block_rows, _LANE), lambda i: (i, 0))],
        out_specs=pl.BlockSpec((block_rows, _LANE), lambda i: (i, 0)),
        compiler_params=pltpu.CompilerParams(
            dimension_semantics=("parallel",),
        ),
        cost_estimate=pl.CostEstimate(
            flops=3 * total,              # mul + round + clip per element
            transcendentals=0,
            bytes_accessed=5 * total,     # 4B f32 read + 1B i8 write
        ),
    )(x2d)

    return out2d.reshape(-1)[:total].reshape(orig_shape)


def _reference(x: jax.Array, scale: float) -> jax.Array:
    return jnp.clip(jnp.round(x * scale), -128.0, 127.0).astype(jnp.int8)


if __name__ == "__main__":
    key = jax.random.PRNGKey(0)

    # NCHW input, small shapes: batch=2, channels=4, spatial=16x16
    x = jax.random.normal(key, (2, 4, 16, 16), dtype=jnp.float32)
    y = precision_convert(x, scale=127.0)
    y = jax.block_until_ready(y)
    ref = _reference(x, 127.0)
    assert y.dtype == jnp.int8
    assert y.shape == (2, 4, 16, 16)
    assert bool(jnp.all(y == ref))

    # Exercise the padding path with a shape not divisible by the lane width.
    x_odd = jax.random.normal(jax.random.PRNGKey(1), (2, 3, 5, 7),
                              dtype=jnp.float32)
    y_odd = jax.block_until_ready(precision_convert(x_odd, scale=127.0))
    assert y_odd.shape == (2, 3, 5, 7)
    assert bool(jnp.all(y_odd == _reference(x_odd, 127.0)))

    print("KERNEL_OK")
</pallas_src>

<mosaic_0001>
module attributes {stable_mosaic.version = 11 : i64} {
  func.func @_precision_convert_kernel(%arg0: i32, %arg1: memref<4x512xf32, #tpu.memory_space<vmem>>, %arg2: memref<4x512xi8, #tpu.memory_space<vmem>>) attributes {dimension_semantics = [#tpu.dimension_semantics<parallel>], iteration_bounds = array<i64: 1>, scalar_prefetch = 0 : i64, scratch_operands = 0 : i64, tpu.core_type = #tpu.core_type<tc>, window_params = [{transform_indices = @transform_0, window_bounds = array<i64: 4, 512>}, {transform_indices = @transform_1, window_bounds = array<i64: 4, 512>}]} {
    %c0 = arith.constant 0 : index
    %c0_0 = arith.constant 0 : index
    %0 = vector.load %arg1[%c0, %c0_0] : memref<4x512xf32, #tpu.memory_space<vmem>>, vector<4x512xf32>
    %cst = arith.constant 1.270000e+02 : f32
    %1 = vector.broadcast %cst : f32 to vector<4x512xf32>
    %2 = arith.mulf %0, %1 : vector<4x512xf32>
    %3 = math.roundeven %2 : vector<4x512xf32>
    %cst_1 = arith.constant -1.280000e+02 : f32
    %cst_2 = arith.constant 1.270000e+02 : f32
    %4 = vector.broadcast %cst_1 : f32 to vector<4x512xf32>
    %5 = arith.maximumf %4, %3 : vector<4x512xf32>
    %6 = vector.broadcast %cst_2 : f32 to vector<4x512xf32>
    %7 = arith.minimumf %6, %5 : vector<4x512xf32>
    %8 = arith.fptosi %7 : vector<4x512xf32> to vector<4x512xi8>
    %c0_3 = arith.constant 0 : index
    %c0_4 = arith.constant 0 : index
    %9 = vector.load %arg2[%c0_3, %c0_4] : memref<4x512xi8, #tpu.memory_space<vmem>>, vector<4x512xi8>
    tpu.vector_store %arg2[%c0_3, %c0_4], %8 {strides = array<i32>} : memref<4x512xi8, #tpu.memory_space<vmem>>, vector<4x512xi8>,
    return
  }
  func.func @transform_0(%arg0: i32) -> (i32, i32) {
    %c0_i32 = arith.constant 0 : i32
    %c0_i32_0 = arith.constant 0 : i32
    return %arg0, %c0_i32 : i32, i32
  }
  func.func @transform_1(%arg0: i32) -> (i32, i32) {
    %c0_i32 = arith.constant 0 : i32
    %c0_i32_0 = arith.constant 0 : i32
    return %arg0, %c0_i32 : i32, i32
  }
}

</mosaic_0001>

<llo_original>
// kernel: tpu_custom_call.1
$region0: #{tpu_custom_call.1}
  #allocation0 [shape = 'u32[]', space=smem, size = 0x4, offset = 0x4, fixed_abs, tag = 'smem constant byte address 0x4 - core index']
  #allocation1 [shape = 'u32[144,128]{1,0:T(1,128)}', space=vmem, size = 0x12000, scoped, tag = 'internal scratch']
  %s0 = inlined_call_operand.hbm [shape: f32[4,512], index: 0, kind: input, shape index: {}]
  %s1 = inlined_call_operand.hbm [shape: s8[4,512], index: 1, kind: output, shape index: {}]
  %s2 = sld [smem:[#allocation0]]
  $region18: #{tpu_custom_call.1} parent=0
    _
  %s4 = ssub.s32 1, %s2
  %s5 = scalar_select 0, %s4, %s2
  $region1: #{tpu_custom_call.1} parent=0
    #allocation2 [shape = 'u8[8192]{0}', space=vmem, size = 0x2000, scoped, tag = 'input window, operand 0, single buffered']
    #allocation3 [shape = 's32[1]{0}', space=sflag, size = 0x4, scoped, tag = 'scoped memory for tpu_custom_call.1']
    #allocation4 [shape = 's32[1]{0}', space=sflag, size = 0x4, scoped, tag = 'scoped memory for tpu_custom_call.1']
    #allocation5 [shape = 'u8[2048]{0}', space=vmem, size = 0x800, scoped, tag = 'output window, operand 0, single buffered']
    %6 = vsyncpa [#allocation3], 0
    %7 = vsyncpa [#allocation4], 0
    // Predicated region
    $region2: #{tpu_custom_call.1} parent=1 // pred_check
      _
    $region3: #{tpu_custom_call.1} parent=1 // pred_check_branch
      %9 = sbr.rel (0) target = $region5
    $region4: #{tpu_custom_call.1} parent=1 // pred_region
      %s11 = ssub.s32 256, 256
      %12 = vsyncadd [#allocation3], %s11
      %s14 = sshll.u32 [#allocation2], 4
      %s15 = int_to_ptr.vmem [resolvable:$true] %s14
      %17 = dma.hbm_to_vmem [thread:$0]  %s0, 256, %s15, [#allocation3]
    $region5: #{tpu_custom_call.1} parent=1 // pred_fallthru
      _
    // Predicated region
    $region6: #{tpu_custom_call.1} parent=1 // pred_check
      _
    $region7: #{tpu_custom_call.1} parent=1 // pred_check_branch
      %19 = sbr.rel (0) target = $region9
    $region8: #{tpu_custom_call.1} parent=1 // pred_region
      %20 = dma.done [#allocation3], 256
    $region9: #{tpu_custom_call.1} parent=1 // pred_fallthru
      _
    %v21 = vld [vmem:[#allocation2] sm:$0xff]
    %v22 = vld [vmem:[#allocation2 + $0x8] sm:$0xff]
    %v23 = vmul.f32 %v21, 127.0
    %v24 = vmul.f32 %v22, 127.0
    %v25 = vround.ne.pseudo %v23
    %v26 = vround.ne.pseudo %v24
    %v27 = vmax.f32 %v25, -128.0
    %v28 = vmax.f32 %v26, -128.0
    %v29 = vmin.f32 %v27, 127.0
    %v30 = vmin.f32 %v28, 127.0
    %v31 = vmax.f32 %v29, -128.0
    %v32 = vmax.f32 %v30, -128.0
    %v33 = vmin.f32 %v31, 127.0
    %v34 = vmin.f32 %v32, 127.0
    %v35 = vcvt.f32.s32.to.zero.pseudo %v33
    %v36 = vcvt.f32.s32.to.zero.pseudo %v34
    %v37 = vcombine.high %v35, %v35
    %v38 = vcombine.high %v36, %v36
    %v39 = vpack.c.b16 %v35, %v35
    %v40 = vpack.c.b8 %v39, %v39
    %v41 = vpack.c.b16 %v37, %v37
    %v42 = vpack.c.b8 %v41, %v41
    %v43 = vpack.c.b16 %v36, %v36
    %v44 = vpack.c.b8 %v43, %v43
    %v45 = vpack.c.b16 %v38, %v38
    %v46 = vpack.c.b8 %v45, %v45
    %v47 = vcombine.low %v40, %v42
    %v48 = vcombine.low %v44, %v46
    %v50 = vunpack.c.l.s4 1966171168
    %v51 = vunpack.c.0.s8 %v50
    %v52 = vlaneseq
    %v53 = vshrl.u32 %v52, 7
    %v54 = vsub.s32 %v51, %v53
    %v55 = vrot.slane %v47, %v54
    %v57 = vunpack.c.l.s4 1966171168
    %v58 = vunpack.c.0.s8 %v57
    %v59 = vlaneseq
    %v60 = vshrl.u32 %v59, 7
    %v61 = vsub.s32 %v58, %v60
    %v62 = vrot.slane %v48, %v61
    %v63 = vcombine.low %v55, %v62
    %v65 = vunpack.c.l.s4 1966171168
    %v66 = vunpack.c.0.s8 %v65
    %v67 = vlaneseq
    %v68 = vshrl.u32 %v67, 7
    %v69 = vsub.s32 %v66, %v68
    %v70 = vrot.slane %v63, %v69
    %71 = vst [vmem:[#allocation5] sm:$0xf] %v70
    // Predicated region
    $region10: #{tpu_custom_call.1} parent=1 // pred_check
      _
    $region11: #{tpu_custom_call.1} parent=1 // pred_check_branch
      %73 = sbr.rel (0) target = $region13
    $region12: #{tpu_custom_call.1} parent=1 // pred_region
      %s75 = ssub.s32 64, 64
      %76 = vsyncadd [#allocation4], %s75
      %s78 = sshll.u32 [#allocation5], 4
      %s79 = int_to_ptr.vmem [resolvable:$true] %s78
      %81 = dma.vmem_to_hbm [thread:$0]  %s79, 64, %s1, [#allocation4]
    $region13: #{tpu_custom_call.1} parent=1 // pred_fallthru
      _
    // Predicated region
    $region14: #{tpu_custom_call.1} parent=1 // pred_check
      _
    $region15: #{tpu_custom_call.1} parent=1 // pred_check_branch
      %83 = sbr.rel (0) target = $region17
    $region16: #{tpu_custom_call.1} parent=1 // pred_region
      %84 = dma.done [#allocation4], 64
    $region17: #{tpu_custom_call.1} parent=1 // pred_fallthru
      _
    %85 = vsyncpa [#allocation3], 1
    %86 = vsyncpa [#allocation4], 1

</llo_original>
